<compile_context>
chip_gen: v7x
topology: tpu7x:2x2x1
jax: 0.10.0
libtpu: 0.0.40
codegen_flags: <defaults>
</compile_context>

<pallas_src>
import functools

import jax
import jax.numpy as jnp
from jax.experimental import pallas as pl
from jax.experimental.pallas import tpu as pltpu


def fire_kernel(x_ref, wsq_ref, bsq_ref, wbig_ref, bbig_ref, yy_ref, xx_ref,
                out_ref, scr_ref, *, H, W, RPAD):
    Mb = x_ref.shape[0]          # rows in this batch block = Nb * H * W
    Csq = wsq_ref.shape[1]

    # Zero the halo rows every step.  Cheap (2*RPAD rows) and guarantees the
    # shifted-window reads below never observe garbage, independent of how the
    # grid is partitioned across TensorCores (the border masks already make
    # halo contents semantically irrelevant; this is cheap insurance).
    zeros = jnp.zeros((RPAD, Csq), jnp.float32)
    scr_ref[0:RPAD, :] = zeros
    scr_ref[RPAD + Mb:RPAD + Mb + RPAD, :] = zeros

    # ---- squeeze: 1x1 conv == channel matmul; bias + ReLU in the epilogue ----
    s = jnp.dot(x_ref[...], wsq_ref[...], preferred_element_type=jnp.float32)
    s = jnp.maximum(s + bsq_ref[...], 0.0)                        # (Mb, Csq)

    # Single row-aligned dense store of s into the halo scratch (RPAD is a
    # multiple of 8) — no full-scratch memset, no unaligned interior write.
    scr_ref[RPAD:RPAD + Mb, :] = s

    # ---- border masks (broadcasts + compares hoisted out of the 9-tap unroll) ----
    yy = jnp.broadcast_to(yy_ref[...], (Mb, Csq))
    xx = jnp.broadcast_to(xx_ref[...], (Mb, Csq))
    ymask = {-1: yy >= 1, 0: None, 1: yy <= H - 2}   # row above / below exists
    xmask = {-1: xx >= 1, 0: None, 1: xx <= W - 2}   # column left / right exists

    # ---- im2col: 9 row-shifted copies of s, masked at image borders ----
    taps = []
    for dy in (-1, 0, 1):
        for dx in (-1, 0, 1):
            off = dy * W + dx
            if off == 0:
                taps.append(s)               # center tap straight from registers
                continue
            # window row r holds s[r + off] (neighbors / halo rows get masked)
            win = scr_ref[RPAD + off:RPAD + off + Mb, :]
            m = ymask[dy]
            if xmask[dx] is not None:
                m = xmask[dx] if m is None else jnp.logical_and(m, xmask[dx])
            taps.append(jnp.where(m, win, 0.0))
    patches = jnp.concatenate(taps, axis=-1)                      # (Mb, 9*Csq)

    # ---- fused expand1x1 + expand3x3: ONE big-K matmul, bias + ReLU,
    #      ONE full-width store of all output channels ----
    out = jnp.dot(patches, wbig_ref[...], preferred_element_type=jnp.float32)
    out_ref[...] = jnp.maximum(out + bbig_ref[...], 0.0).astype(out_ref.dtype)


def _pick_batch_block(n, hw, target_rows=512):
    """Images per grid step.

    Constraints / preferences:
      * Nb divides N.
      * Row block Nb*hw must be a multiple of 8 (TPU sublane tiling) unless it
        covers the whole flattened array (Nb == N).
      * Enough rows to feed the MXU, but keep >= 2 grid steps when the batch
        allows it so 2-TensorCore chips can split the grid.
    """
    divisors = [d for d in range(1, n + 1) if n % d == 0]
    valid = [d for d in divisors if (d * hw) % 8 == 0] or [n]
    cands = [d for d in valid if d * hw <= max(target_rows, min(valid) * hw)]
    nb = max(cands)
    if n // nb < 2:
        smaller = [d for d in valid if n // d >= 2]
        if smaller:
            nb = max(smaller)
    return nb


def fire_forward(x_nchw, wsq, bsq, we1, be1, we3, be3, *, batch_block=None):
    """x_nchw: (N, Cin, H, W) float32.  Returns (N, Ce1+Ce3, H, W)."""
    N, Cin, H, W = x_nchw.shape
    Csq = wsq.shape[1]
    Ce1 = we1.shape[1]
    Ce3 = we3.shape[3]
    Cout = Ce1 + Ce3

    Nb = batch_block if batch_block is not None else _pick_batch_block(N, H * W)
    assert N % Nb == 0
    Mb = Nb * H * W
    RPAD = ((W + 1 + 7) // 8) * 8        # halo rows, rounded up for alignment

    # NCHW -> NHWC -> (N*H*W, Cin); rows ordered (n, y, x).
    x2 = jnp.transpose(x_nchw, (0, 2, 3, 1)).reshape(N * H * W, Cin)

    # Fused expand weight: rows = [tap t = ky*3+kx] x [squeeze channel];
    # left Ce1 cols = expand1x1 (center tap only), right Ce3 cols = expand3x3.
    w_left = jnp.zeros((9, Csq, Ce1), wsq.dtype).at[4].set(we1)
    w_big = jnp.concatenate([w_left, we3.reshape(9, Csq, Ce3)], axis=-1)
    w_big = w_big.reshape(9 * Csq, Cout)
    b_big = jnp.concatenate([be1, be3]).reshape(1, Cout)

    # Per-row (y, x) coordinates inside one batch block (same for every block,
    # so Pallas fetches them only once — constant index_map).
    yy = jnp.tile(jnp.repeat(jnp.arange(H, dtype=jnp.int32), W), Nb).reshape(Mb, 1)
    xx = jnp.tile(jnp.arange(W, dtype=jnp.int32), Nb * H).reshape(Mb, 1)

    kernel = functools.partial(fire_kernel, H=H, W=W, RPAD=RPAD)

    M = N * H * W
    cost = pl.CostEstimate(
        flops=2 * M * (Cin * Csq + 9 * Csq * Cout),
        transcendentals=0,
        bytes_accessed=4 * (M * Cin + M * Cout + Cin * Csq + 9 * Csq * Cout
                            + Csq + Cout + 2 * M),
    )

    out2 = pl.pallas_call(
        kernel,
        out_shape=jax.ShapeDtypeStruct((N * H * W, Cout), x_nchw.dtype),
        grid_spec=pltpu.PrefetchScalarGridSpec(
            num_scalar_prefetch=0,
            grid=(N // Nb,),
            in_specs=[
                pl.BlockSpec((Mb, Cin), lambda n: (n, 0)),         # x rows
                pl.BlockSpec((Cin, Csq), lambda n: (0, 0)),        # squeeze weight
                pl.BlockSpec((1, Csq), lambda n: (0, 0)),          # squeeze bias
                pl.BlockSpec((9 * Csq, Cout), lambda n: (0, 0)),   # fused expand weight
                pl.BlockSpec((1, Cout), lambda n: (0, 0)),         # fused expand bias
                pl.BlockSpec((Mb, 1), lambda n: (0, 0)),           # per-row y coord
                pl.BlockSpec((Mb, 1), lambda n: (0, 0)),           # per-row x coord
            ],
            out_specs=pl.BlockSpec((Mb, Cout), lambda n: (n, 0)),
            scratch_shapes=[pltpu.VMEM((Mb + 2 * RPAD, Csq), jnp.float32)],
        ),
        compiler_params=pltpu.CompilerParams(dimension_semantics=("parallel",)),
        cost_estimate=cost,
    )(x2, wsq, bsq.reshape(1, Csq), w_big, b_big, yy, xx)

    # (N*H*W, Cout) -> NHWC -> NCHW.  For real Fire sizes Cout is a multiple of
    # 128, so the kernel's output store is already lane-dense.
    return jnp.transpose(out2.reshape(N, H, W, Cout), (0, 3, 1, 2))


def fire_reference(x_nchw, wsq, bsq, we1, be1, we3, be3):
    """Pure-JAX reference of the Fire forward pass (same layouts as wrapper)."""
    x = jnp.transpose(x_nchw, (0, 2, 3, 1))  # NHWC
    s = jnp.maximum(jnp.einsum('nhwc,cd->nhwd', x, wsq) + bsq, 0.0)
    e1 = jnp.maximum(jnp.einsum('nhwc,cd->nhwd', s, we1) + be1, 0.0)
    sp = jnp.pad(s, ((0, 0), (1, 1), (1, 1), (0, 0)))
    H, W = x.shape[1], x.shape[2]
    acc = jnp.zeros(e1.shape[:3] + (we3.shape[3],), jnp.float32) + be3
    for dy in range(3):
        for dx in range(3):
            acc = acc + jnp.einsum('nhwc,cd->nhwd',
                                   sp[:, dy:dy + H, dx:dx + W, :], we3[dy, dx])
    e3 = jnp.maximum(acc, 0.0)
    out = jnp.concatenate([e1, e3], axis=-1)
    return jnp.transpose(out, (0, 3, 1, 2))


if __name__ == "__main__":
    # Fire(inplanes=8, squeeze_planes=4, expand1x1_planes=8, expand3x3_planes=8)
    N, Cin, H, W = 2, 8, 8, 8
    Csq, Ce1, Ce3 = 4, 8, 8

    key = jax.random.PRNGKey(0)
    kx_, k1, k2, k3, k4, k5, k6 = jax.random.split(key, 7)

    x = jax.random.normal(kx_, (N, Cin, H, W), jnp.float32)

    # Deterministic synthetic parameters (layouts chosen for the kernel:
    # 1x1 weights as (Cin, Cout); 3x3 weights as (kh, kw, Cin, Cout)).
    wsq = jax.random.normal(k1, (Cin, Csq), jnp.float32) * 0.2
    bsq = jax.random.normal(k2, (Csq,), jnp.float32) * 0.1
    we1 = jax.random.normal(k3, (Csq, Ce1), jnp.float32) * 0.2
    be1 = jax.random.normal(k4, (Ce1,), jnp.float32) * 0.1
    we3 = jax.random.normal(k5, (3, 3, Csq, Ce3), jnp.float32) * 0.2
    be3 = jax.random.normal(k6, (Ce3,), jnp.float32) * 0.1

    out = fire_forward(x, wsq, bsq, we1, be1, we3, be3)
    out = jax.block_until_ready(out)

    ref = fire_reference(x, wsq, bsq, we1, be1, we3, be3)
    assert out.shape == (N, Ce1 + Ce3, H, W), out.shape
    assert jnp.allclose(out, ref, atol=1e-4, rtol=1e-4), \
        float(jnp.max(jnp.abs(out - ref)))

    print("KERNEL_OK")
</pallas_src>

<mosaic_0001>
module attributes {stable_mosaic.version = 11 : i64} {
  func.func @fire_kernel(%arg0: i32, %arg1: memref<64x8xf32, #tpu.memory_space<vmem>>, %arg2: memref<8x4xf32, #tpu.memory_space<vmem>>, %arg3: memref<1x4xf32, #tpu.memory_space<vmem>>, %arg4: memref<36x16xf32, #tpu.memory_space<vmem>>, %arg5: memref<1x16xf32, #tpu.memory_space<vmem>>, %arg6: memref<64x1xi32, #tpu.memory_space<vmem>>, %arg7: memref<64x1xi32, #tpu.memory_space<vmem>>, %arg8: memref<64x16xf32, #tpu.memory_space<vmem>>, %arg9: memref<96x4xf32, #tpu.memory_space<vmem>>) attributes {dimension_semantics = [#tpu.dimension_semantics<parallel>], iteration_bounds = array<i64: 2>, scalar_prefetch = 0 : i64, scratch_operands = 1 : i64, tpu.core_type = #tpu.core_type<tc>, window_params = [{transform_indices = @transform_0, window_bounds = array<i64: 64, 8>}, {pipeline_mode = #tpu.pipeline_mode<synchronous>, transform_indices = @transform_1, window_bounds = array<i64: 8, 4>}, {pipeline_mode = #tpu.pipeline_mode<synchronous>, transform_indices = @transform_2, window_bounds = array<i64: 1, 4>}, {pipeline_mode = #tpu.pipeline_mode<synchronous>, transform_indices = @transform_3, window_bounds = array<i64: 36, 16>}, {pipeline_mode = #tpu.pipeline_mode<synchronous>, transform_indices = @transform_4, window_bounds = array<i64: 1, 16>}, {pipeline_mode = #tpu.pipeline_mode<synchronous>, transform_indices = @transform_5, window_bounds = array<i64: 64, 1>}, {pipeline_mode = #tpu.pipeline_mode<synchronous>, transform_indices = @transform_6, window_bounds = array<i64: 64, 1>}, {transform_indices = @transform_7, window_bounds = array<i64: 64, 16>}]} {
    %cst = arith.constant 0.000000e+00 : f32
    %0 = vector.broadcast %cst : f32 to vector<16x4xf32>
    %c0 = arith.constant 0 : index
    %c0_0 = arith.constant 0 : index
    %1 = vector.load %arg9[%c0, %c0_0] : memref<96x4xf32, #tpu.memory_space<vmem>>, vector<16x4xf32>
    tpu.vector_store %arg9[%c0, %c0_0], %0 {strides = array<i32>} : memref<96x4xf32, #tpu.memory_space<vmem>>, vector<16x4xf32>,
    %c80 = arith.constant 80 : index
    %c0_1 = arith.constant 0 : index
    %2 = vector.load %arg9[%c80, %c0_1] : memref<96x4xf32, #tpu.memory_space<vmem>>, vector<16x4xf32>
    tpu.vector_store %arg9[%c80, %c0_1], %0 {strides = array<i32>} : memref<96x4xf32, #tpu.memory_space<vmem>>, vector<16x4xf32>,
    %c0_2 = arith.constant 0 : index
    %c0_3 = arith.constant 0 : index
    %3 = vector.load %arg1[%c0_2, %c0_3] : memref<64x8xf32, #tpu.memory_space<vmem>>, vector<64x8xf32>
    %c0_4 = arith.constant 0 : index
    %c0_5 = arith.constant 0 : index
    %4 = vector.load %arg2[%c0_4, %c0_5] : memref<8x4xf32, #tpu.memory_space<vmem>>, vector<8x4xf32>
    %cst_6 = arith.constant dense<0.000000e+00> : vector<64x4xf32>
    %5 = tpu.matmul %3, %4, %cst_6 {dimension_numbers = #tpu.dot_dimension_numbers<[1], [0], [0], [1], [0, 0, 1, 1], [], []>} : vector<64x8xf32>, vector<8x4xf32>, vector<64x4xf32> -> vector<64x4xf32>
    %c0_7 = arith.constant 0 : index
    %c0_8 = arith.constant 0 : index
    %6 = vector.load %arg3[%c0_7, %c0_8] : memref<1x4xf32, #tpu.memory_space<vmem>>, vector<1x4xf32>
    %7 = vector.broadcast %6 : vector<1x4xf32> to vector<64x4xf32>
    %8 = arith.addf %5, %7 : vector<64x4xf32>
    %cst_9 = arith.constant 0.000000e+00 : f32
    %9 = vector.broadcast %cst_9 : f32 to vector<64x4xf32>
    %10 = arith.maximumf %8, %9 : vector<64x4xf32>
    %c16 = arith.constant 16 : index
    %c0_10 = arith.constant 0 : index
    %11 = vector.load %arg9[%c16, %c0_10] : memref<96x4xf32, #tpu.memory_space<vmem>>, vector<64x4xf32>
    tpu.vector_store %arg9[%c16, %c0_10], %10 {strides = array<i32>} : memref<96x4xf32, #tpu.memory_space<vmem>>, vector<64x4xf32>,
    %c0_11 = arith.constant 0 : index
    %c0_12 = arith.constant 0 : index
    %12 = vector.load %arg6[%c0_11, %c0_12] : memref<64x1xi32, #tpu.memory_space<vmem>>, vector<64x1xi32>
    %13 = vector.shape_cast %12 : vector<64x1xi32> to vector<64x1xi32>
    %14 = vector.broadcast %13 : vector<64x1xi32> to vector<64x4xi32>
    %c0_13 = arith.constant 0 : index
    %c0_14 = arith.constant 0 : index
    %15 = vector.load %arg7[%c0_13, %c0_14] : memref<64x1xi32, #tpu.memory_space<vmem>>, vector<64x1xi32>
    %16 = vector.shape_cast %15 : vector<64x1xi32> to vector<64x1xi32>
    %17 = vector.broadcast %16 : vector<64x1xi32> to vector<64x4xi32>
    %c1_i32 = arith.constant 1 : i32
    %18 = vector.broadcast %c1_i32 : i32 to vector<64x4xi32>
    %19 = arith.cmpi sge, %14, %18 : vector<64x4xi32>
    %c6_i32 = arith.constant 6 : i32
    %20 = vector.broadcast %c6_i32 : i32 to vector<64x4xi32>
    %21 = arith.cmpi sle, %14, %20 : vector<64x4xi32>
    %c1_i32_15 = arith.constant 1 : i32
    %22 = vector.broadcast %c1_i32_15 : i32 to vector<64x4xi32>
    %23 = arith.cmpi sge, %17, %22 : vector<64x4xi32>
    %c6_i32_16 = arith.constant 6 : i32
    %24 = vector.broadcast %c6_i32_16 : i32 to vector<64x4xi32>
    %25 = arith.cmpi sle, %17, %24 : vector<64x4xi32>
    %c7 = arith.constant 7 : index
    %c0_17 = arith.constant 0 : index
    %26 = vector.load %arg9[%c7, %c0_17] : memref<96x4xf32, #tpu.memory_space<vmem>>, vector<64x4xf32>
    %27 = arith.andi %19, %23 : vector<64x4xi1>
    %cst_18 = arith.constant 0.000000e+00 : f32
    %28 = vector.broadcast %cst_18 : f32 to vector<64x4xf32>
    %29 = arith.select %27, %26, %28 : vector<64x4xi1>, vector<64x4xf32>
    %c8 = arith.constant 8 : index
    %c0_19 = arith.constant 0 : index
    %30 = vector.load %arg9[%c8, %c0_19] : memref<96x4xf32, #tpu.memory_space<vmem>>, vector<64x4xf32>
    %cst_20 = arith.constant 0.000000e+00 : f32
    %31 = vector.broadcast %cst_20 : f32 to vector<64x4xf32>
    %32 = arith.select %19, %30, %31 : vector<64x4xi1>, vector<64x4xf32>
    %c9 = arith.constant 9 : index
    %c0_21 = arith.constant 0 : index
    %33 = vector.load %arg9[%c9, %c0_21] : memref<96x4xf32, #tpu.memory_space<vmem>>, vector<64x4xf32>
    %34 = arith.andi %19, %25 : vector<64x4xi1>
    %cst_22 = arith.constant 0.000000e+00 : f32
    %35 = vector.broadcast %cst_22 : f32 to vector<64x4xf32>
    %36 = arith.select %34, %33, %35 : vector<64x4xi1>, vector<64x4xf32>
    %c15 = arith.constant 15 : index
    %c0_23 = arith.constant 0 : index
    %37 = vector.load %arg9[%c15, %c0_23] : memref<96x4xf32, #tpu.memory_space<vmem>>, vector<64x4xf32>
    %cst_24 = arith.constant 0.000000e+00 : f32
    %38 = vector.broadcast %cst_24 : f32 to vector<64x4xf32>
    %39 = arith.select %23, %37, %38 : vector<64x4xi1>, vector<64x4xf32>
    %c17 = arith.constant 17 : index
    %c0_25 = arith.constant 0 : index
    %40 = vector.load %arg9[%c17, %c0_25] : memref<96x4xf32, #tpu.memory_space<vmem>>, vector<64x4xf32>
    %cst_26 = arith.constant 0.000000e+00 : f32
    %41 = vector.broadcast %cst_26 : f32 to vector<64x4xf32>
    %42 = arith.select %25, %40, %41 : vector<64x4xi1>, vector<64x4xf32>
    %c23 = arith.constant 23 : index
    %c0_27 = arith.constant 0 : index
    %43 = vector.load %arg9[%c23, %c0_27] : memref<96x4xf32, #tpu.memory_space<vmem>>, vector<64x4xf32>
    %44 = arith.andi %21, %23 : vector<64x4xi1>
    %cst_28 = arith.constant 0.000000e+00 : f32
    %45 = vector.broadcast %cst_28 : f32 to vector<64x4xf32>
    %46 = arith.select %44, %43, %45 : vector<64x4xi1>, vector<64x4xf32>
    %c24 = arith.constant 24 : index
    %c0_29 = arith.constant 0 : index
    %47 = vector.load %arg9[%c24, %c0_29] : memref<96x4xf32, #tpu.memory_space<vmem>>, vector<64x4xf32>
    %cst_30 = arith.constant 0.000000e+00 : f32
    %48 = vector.broadcast %cst_30 : f32 to vector<64x4xf32>
    %49 = arith.select %21, %47, %48 : vector<64x4xi1>, vector<64x4xf32>
    %c25 = arith.constant 25 : index
    %c0_31 = arith.constant 0 : index
    %50 = vector.load %arg9[%c25, %c0_31] : memref<96x4xf32, #tpu.memory_space<vmem>>, vector<64x4xf32>
    %51 = arith.andi %21, %25 : vector<64x4xi1>
    %cst_32 = arith.constant 0.000000e+00 : f32
    %52 = vector.broadcast %cst_32 : f32 to vector<64x4xf32>
    %53 = arith.select %51, %50, %52 : vector<64x4xi1>, vector<64x4xf32>
    %54 = tpu.concatenate %29, %32, %36, %39, %10, %42, %46, %49, %53 in 1 : vector<64x4xf32>, vector<64x4xf32>, vector<64x4xf32>, vector<64x4xf32>, vector<64x4xf32>, vector<64x4xf32>, vector<64x4xf32>, vector<64x4xf32>, vector<64x4xf32> -> vector<64x36xf32>
    %c0_33 = arith.constant 0 : index
    %c0_34 = arith.constant 0 : index
    %55 = vector.load %arg4[%c0_33, %c0_34] : memref<36x16xf32, #tpu.memory_space<vmem>>, vector<36x16xf32>
    %cst_35 = arith.constant dense<0.000000e+00> : vector<64x16xf32>
    %56 = tpu.matmul %54, %55, %cst_35 {dimension_numbers = #tpu.dot_dimension_numbers<[1], [0], [0], [1], [0, 0, 1, 1], [], []>} : vector<64x36xf32>, vector<36x16xf32>, vector<64x16xf32> -> vector<64x16xf32>
    %c0_36 = arith.constant 0 : index
    %c0_37 = arith.constant 0 : index
    %57 = vector.load %arg5[%c0_36, %c0_37] : memref<1x16xf32, #tpu.memory_space<vmem>>, vector<1x16xf32>
    %58 = vector.broadcast %57 : vector<1x16xf32> to vector<64x16xf32>
    %59 = arith.addf %56, %58 : vector<64x16xf32>
    %cst_38 = arith.constant 0.000000e+00 : f32
    %60 = vector.broadcast %cst_38 : f32 to vector<64x16xf32>
    %61 = arith.maximumf %59, %60 : vector<64x16xf32>
    %c0_39 = arith.constant 0 : index
    %c0_40 = arith.constant 0 : index
    %62 = vector.load %arg8[%c0_39, %c0_40] : memref<64x16xf32, #tpu.memory_space<vmem>>, vector<64x16xf32>
    tpu.vector_store %arg8[%c0_39, %c0_40], %61 {strides = array<i32>} : memref<64x16xf32, #tpu.memory_space<vmem>>, vector<64x16xf32>,
    return
  }
  func.func @transform_0(%arg0: i32) -> (i32, i32) {
    %c0_i32 = arith.constant 0 : i32
    %c0_i32_0 = arith.constant 0 : i32
    return %arg0, %c0_i32 : i32, i32
  }
  func.func @transform_1(%arg0: i32) -> (i32, i32) {
    %c0_i32 = arith.constant 0 : i32
    %c0_i32_0 = arith.constant 0 : i32
    %c0_i32_1 = arith.constant 0 : i32
    return %c0_i32, %c0_i32_0 : i32, i32
  }
  func.func @transform_2(%arg0: i32) -> (i32, i32) {
    %c0_i32 = arith.constant 0 : i32
    %c0_i32_0 = arith.constant 0 : i32
    %c0_i32_1 = arith.constant 0 : i32
    return %c0_i32, %c0_i32_0 : i32, i32
  }
  func.func @transform_3(%arg0: i32) -> (i32, i32) {
    %c0_i32 = arith.constant 0 : i32
    %c0_i32_0 = arith.constant 0 : i32
    %c0_i32_1 = arith.constant 0 : i32
    return %c0_i32, %c0_i32_0 : i32, i32
  }
  func.func @transform_4(%arg0: i32) -> (i32, i32) {
    %c0_i32 = arith.constant 0 : i32
    %c0_i32_0 = arith.constant 0 : i32
    %c0_i32_1 = arith.constant 0 : i32
    return %c0_i32, %c0_i32_0 : i32, i32
  }
  func.func @transform_5(%arg0: i32) -> (i32, i32) {
    %c0_i32 = arith.constant 0 : i32
    %c0_i32_0 = arith.constant 0 : i32
    %c0_i32_1 = arith.constant 0 : i32
    return %c0_i32, %c0_i32_0 : i32, i32
  }
  func.func @transform_6(%arg0: i32) -> (i32, i32) {
    %c0_i32 = arith.constant 0 : i32
    %c0_i32_0 = arith.constant 0 : i32
    %c0_i32_1 = arith.constant 0 : i32
    return %c0_i32, %c0_i32_0 : i32, i32
  }
  func.func @transform_7(%arg0: i32) -> (i32, i32) {
    %c0_i32 = arith.constant 0 : i32
    %c0_i32_0 = arith.constant 0 : i32
    return %arg0, %c0_i32 : i32, i32
  }
}

</mosaic_0001>

<llo_original>
// kernel: tpu_custom_call.1
$region0: #{tpu_custom_call.1}
  #allocation0 [shape = 'u32[]', space=smem, size = 0x4, offset = 0x4, fixed_abs, tag = 'smem constant byte address 0x4 - core index']
  #allocation1 [shape = 'u32[144,128]{1,0:T(1,128)}', space=vmem, size = 0x12000, scoped, tag = 'internal scratch']
  #allocation2 [shape = 'f32[96,4]{1,0:T(8,128)}', space=vmem, size = 0xc000, scoped, tag = 'scratch operand']
  %s0 = inlined_call_operand.vmem [shape: f32[128,8], index: 0, kind: input, shape index: {}]
  %s1 = inlined_call_operand.vmem [shape: f32[8,4], index: 1, kind: input, shape index: {}]
  %s2 = inlined_call_operand.vmem [shape: f32[1,4], index: 2, kind: input, shape index: {}]
  %s3 = inlined_call_operand.vmem [shape: f32[36,16], index: 3, kind: input, shape index: {}]
  %s4 = inlined_call_operand.vmem [shape: f32[1,16], index: 4, kind: input, shape index: {}]
  %s5 = inlined_call_operand.vmem [shape: s32[64,1], index: 5, kind: input, shape index: {}]
  %s6 = inlined_call_operand.vmem [shape: s32[64,1], index: 6, kind: input, shape index: {}]
  %s7 = inlined_call_operand.vmem [shape: f32[128,16], index: 7, kind: output, shape index: {}]
  %s8 = sld [smem:[#allocation0]]
  $region61: #{tpu_custom_call.1} parent=0
    _
  %s10 = ssub.s32 1, %s8
  %s11 = scalar_select 0, %s10, %s8
  loop: start=0, step=1, limit=4
  $region2: #{tpu_custom_call.1} parent=0 // loop_pre_header
    _
  $region3: #{tpu_custom_call.1} parent=0 // loop_header
    %s13 = sphi 0, %s17
    %p14 = scmp.ge.s32.totalorder %s13, 4
    %s23 = sphi 0, %s25
    %s26 = sphi 0, %s23
    %s27 = sphi 0, %s26
    %s43 = sphi 0, %s27
    %s47 = sphi 0, %s47
    %s49 = sphi 0, %s47
    %s50 = sphi 0, %s49
    %s64 = sphi 0, %s50
    %s68 = sphi 0, %s68
    %s70 = sphi 0, %s68
    %s71 = sphi 0, %s70
    %s85 = sphi 0, %s71
    %s89 = sphi 0, %s89
    %s91 = sphi 0, %s89
    %s92 = sphi 0, %s91
    %s106 = sphi 0, %s92
    %s110 = sphi 0, %s110
    %s112 = sphi 0, %s110
    %s113 = sphi 0, %s112
    %s127 = sphi 0, %s113
    %s131 = sphi 0, %s131
    %s133 = sphi 0, %s131
    %s134 = sphi 0, %s133
    %s148 = sphi 0, %s134
    %s152 = sphi 0, %s152
    %s154 = sphi 0, %s152
    %s155 = sphi 0, %s154
    %s169 = sphi 0, %s155
    %s175 = sphi 0, %s177
    %s178 = sphi 0, %s175
    %s179 = sphi 0, %s178
    %s195 = sphi 0, %s179
  $region4: #{tpu_custom_call.1} parent=0 // loop_header_branch
    %16 = sbr.rel (%p14) target = $region8
  $region5: #{tpu_custom_call.1} parent=0 // loop_body
    %s18 = ssub.s32 %s13, 1
    %s19 = ssub.s32 %s13, 2
    %s20 = sadd.s32 %s13, 1
    %s21 = ssub.s32 %s13, %s20
    %p22 = scmp.eq.s32.totalorder %s21, 0
    %s24 = sadd.s32 %s23, 1
    %s25 = scalar_select %p22, %s23, %s24
    %p28 = pneg %p22
    %p29 = scmp.eq.s32.totalorder %s13, 1
    %p30 = por %p28, %p29
    %p31 = scmp.ne.s32.totalorder %s23, %s26
    %p32 = scmp.eq.s32.totalorder %s13, 0
    %p33 = por %p31, %p32
    %p34 = scmp.ne.s32.totalorder %s23, %s26
    %p35 = scmp.eq.s32.totalorder %s18, 1
    %p36 = por %p34, %p35
    %p37 = scmp.ne.s32.totalorder %s26, %s27
    %p38 = scmp.eq.s32.totalorder %s18, 0
    %p39 = por %p37, %p38
    %p40 = scmp.ne.s32.totalorder %s26, %s27
    %p41 = scmp.eq.s32.totalorder %s19, 1
    %p42 = por %p40, %p41
    %p44 = scmp.ne.s32.totalorder %s27, %s43
    %p45 = scmp.eq.s32.totalorder %s19, 0
    %p46 = por %p44, %p45
    %s48 = sadd.s32 %s47, 1
    %p51 = scmp.eq.s32.totalorder %s13, 1
    %p52 = scmp.ne.s32.totalorder %s47, %s49
    %p53 = scmp.eq.s32.totalorder %s13, 0
    %p54 = por %p52, %p53
    %p55 = scmp.ne.s32.totalorder %s47, %s49
    %p56 = scmp.eq.s32.totalorder %s18, 1
    %p57 = por %p55, %p56
    %p58 = scmp.ne.s32.totalorder %s49, %s50
    %p59 = scmp.eq.s32.totalorder %s18, 0
    %p60 = por %p58, %p59
    %p61 = scmp.ne.s32.totalorder %s49, %s50
    %p62 = scmp.eq.s32.totalorder %s19, 1
    %p63 = por %p61, %p62
    %p65 = scmp.ne.s32.totalorder %s50, %s64
    %p66 = scmp.eq.s32.totalorder %s19, 0
    %p67 = por %p65, %p66
    %s69 = sadd.s32 %s68, 1
    %p72 = scmp.eq.s32.totalorder %s13, 1
    %p73 = scmp.ne.s32.totalorder %s68, %s70
    %p74 = scmp.eq.s32.totalorder %s13, 0
    %p75 = por %p73, %p74
    %p76 = scmp.ne.s32.totalorder %s68, %s70
    %p77 = scmp.eq.s32.totalorder %s18, 1
    %p78 = por %p76, %p77
    %p79 = scmp.ne.s32.totalorder %s70, %s71
    %p80 = scmp.eq.s32.totalorder %s18, 0
    %p81 = por %p79, %p80
    %p82 = scmp.ne.s32.totalorder %s70, %s71
    %p83 = scmp.eq.s32.totalorder %s19, 1
    %p84 = por %p82, %p83
    %p86 = scmp.ne.s32.totalorder %s71, %s85
    %p87 = scmp.eq.s32.totalorder %s19, 0
    %p88 = por %p86, %p87
    %s90 = sadd.s32 %s89, 1
    %p93 = scmp.eq.s32.totalorder %s13, 1
    %p94 = scmp.ne.s32.totalorder %s89, %s91
    %p95 = scmp.eq.s32.totalorder %s13, 0
    %p96 = por %p94, %p95
    %p97 = scmp.ne.s32.totalorder %s89, %s91
    %p98 = scmp.eq.s32.totalorder %s18, 1
    %p99 = por %p97, %p98
    %p100 = scmp.ne.s32.totalorder %s91, %s92
    %p101 = scmp.eq.s32.totalorder %s18, 0
    %p102 = por %p100, %p101
    %p103 = scmp.ne.s32.totalorder %s91, %s92
    %p104 = scmp.eq.s32.totalorder %s19, 1
    %p105 = por %p103, %p104
    %p107 = scmp.ne.s32.totalorder %s92, %s106
    %p108 = scmp.eq.s32.totalorder %s19, 0
    %p109 = por %p107, %p108
    %s111 = sadd.s32 %s110, 1
    %p114 = scmp.eq.s32.totalorder %s13, 1
    %p115 = scmp.ne.s32.totalorder %s110, %s112
    %p116 = scmp.eq.s32.totalorder %s13, 0
    %p117 = por %p115, %p116
    %p118 = scmp.ne.s32.totalorder %s110, %s112
    %p119 = scmp.eq.s32.totalorder %s18, 1
    %p120 = por %p118, %p119
    %p121 = scmp.ne.s32.totalorder %s112, %s113
    %p122 = scmp.eq.s32.totalorder %s18, 0
    %p123 = por %p121, %p122
    %p124 = scmp.ne.s32.totalorder %s112, %s113
    %p125 = scmp.eq.s32.totalorder %s19, 1
    %p126 = por %p124, %p125
    %p128 = scmp.ne.s32.totalorder %s113, %s127
    %p129 = scmp.eq.s32.totalorder %s19, 0
    %p130 = por %p128, %p129
    %s132 = sadd.s32 %s131, 1
    %p135 = scmp.eq.s32.totalorder %s13, 1
    %p136 = scmp.ne.s32.totalorder %s131, %s133
    %p137 = scmp.eq.s32.totalorder %s13, 0
    %p138 = por %p136, %p137
    %p139 = scmp.ne.s32.totalorder %s131, %s133
    %p140 = scmp.eq.s32.totalorder %s18, 1
    %p141 = por %p139, %p140
    %p142 = scmp.ne.s32.totalorder %s133, %s134
    %p143 = scmp.eq.s32.totalorder %s18, 0
    %p144 = por %p142, %p143
    %p145 = scmp.ne.s32.totalorder %s133, %s134
    %p146 = scmp.eq.s32.totalorder %s19, 1
    %p147 = por %p145, %p146
    %p149 = scmp.ne.s32.totalorder %s134, %s148
    %p150 = scmp.eq.s32.totalorder %s19, 0
    %p151 = por %p149, %p150
    %s153 = sadd.s32 %s152, 1
    %p156 = scmp.eq.s32.totalorder %s13, 1
    %p157 = scmp.ne.s32.totalorder %s152, %s154
    %p158 = scmp.eq.s32.totalorder %s13, 0
    %p159 = por %p157, %p158
    %p160 = scmp.ne.s32.totalorder %s152, %s154
    %p161 = scmp.eq.s32.totalorder %s18, 1
    %p162 = por %p160, %p161
    %p163 = scmp.ne.s32.totalorder %s154, %s155
    %p164 = scmp.eq.s32.totalorder %s18, 0
    %p165 = por %p163, %p164
    %p166 = scmp.ne.s32.totalorder %s154, %s155
    %p167 = scmp.eq.s32.totalorder %s19, 1
    %p168 = por %p166, %p167
    %p170 = scmp.ne.s32.totalorder %s155, %s169
    %p171 = scmp.eq.s32.totalorder %s19, 0
    %p172 = por %p170, %p171
    %s173 = ssub.s32 %s13, %s20
    %p174 = scmp.eq.s32.totalorder %s173, 0
    %s176 = sadd.s32 %s175, 1
    %s177 = scalar_select %p174, %s175, %s176
    %p180 = pneg %p174
    %p181 = scmp.eq.s32.totalorder %s13, 1
    %p182 = por %p180, %p181
    %p183 = scmp.ne.s32.totalorder %s175, %s178
    %p184 = scmp.eq.s32.totalorder %s13, 0
    %p185 = por %p183, %p184
    %p186 = scmp.ne.s32.totalorder %s175, %s178
    %p187 = scmp.eq.s32.totalorder %s18, 1
    %p188 = por %p186, %p187
    %p189 = scmp.ne.s32.totalorder %s178, %s179
    %p190 = scmp.eq.s32.totalorder %s18, 0
    %p191 = por %p189, %p190
    %p192 = scmp.ne.s32.totalorder %s178, %s179
    %p193 = scmp.eq.s32.totalorder %s19, 1
    %p194 = por %p192, %p193
    %p196 = scmp.ne.s32.totalorder %s179, %s195
    %p197 = scmp.eq.s32.totalorder %s19, 0
    %p198 = por %p196, %p197
    %p199 = scmp.le.s32.totalorder 1, %s13
    %p200 = scmp.lt.s32.totalorder %s13, 3
    %p201 = pnand %p199, %p200
    %p202 = pneg %p201
    // Predicated region
    $region9: #{tpu_custom_call.1} parent=5 // pred_check
      _
    $region10: #{tpu_custom_call.1} parent=5 // pred_check_branch
      %204 = sbr.rel (%p201) target = $region12
    $region11: #{tpu_custom_call.1} parent=5 // pred_region
      %s205 = ssub.s32 %s13, 1
      // Predicated region
      $region13: #{tpu_custom_call.1} parent=11 // pred_check
        %p206 = pneg %p60
      $region14: #{tpu_custom_call.1} parent=11 // pred_check_branch
        %208 = sbr.rel (%p206) target = $region16
      $region15: #{tpu_custom_call.1} parent=11 // pred_region
        _
      $region16: #{tpu_custom_call.1} parent=11 // pred_fallthru
        _
      // Predicated region
      $region17: #{tpu_custom_call.1} parent=11 // pred_check
        %p209 = pneg %p81
      $region18: #{tpu_custom_call.1} parent=11 // pred_check_branch
        %211 = sbr.rel (%p209) target = $region20
      $region19: #{tpu_custom_call.1} parent=11 // pred_region
        _
      $region20: #{tpu_custom_call.1} parent=11 // pred_fallthru
        _
      // Predicated region
      $region21: #{tpu_custom_call.1} parent=11 // pred_check
        %p212 = pneg %p102
      $region22: #{tpu_custom_call.1} parent=11 // pred_check_branch
        %214 = sbr.rel (%p212) target = $region24
      $region23: #{tpu_custom_call.1} parent=11 // pred_region
        _
      $region24: #{tpu_custom_call.1} parent=11 // pred_fallthru
        _
      // Predicated region
      $region25: #{tpu_custom_call.1} parent=11 // pred_check
        %p215 = pneg %p123
      $region26: #{tpu_custom_call.1} parent=11 // pred_check_branch
        %217 = sbr.rel (%p215) target = $region28
      $region27: #{tpu_custom_call.1} parent=11 // pred_region
        _
      $region28: #{tpu_custom_call.1} parent=11 // pred_fallthru
        _
      // Predicated region
      $region29: #{tpu_custom_call.1} parent=11 // pred_check
        %p218 = pneg %p144
      $region30: #{tpu_custom_call.1} parent=11 // pred_check_branch
        %220 = sbr.rel (%p218) target = $region32
      $region31: #{tpu_custom_call.1} parent=11 // pred_region
        _
      $region32: #{tpu_custom_call.1} parent=11 // pred_fallthru
        _
      // Predicated region
      $region33: #{tpu_custom_call.1} parent=11 // pred_check
        %p221 = pneg %p165
      $region34: #{tpu_custom_call.1} parent=11 // pred_check_branch
        %223 = sbr.rel (%p221) target = $region36
      $region35: #{tpu_custom_call.1} parent=11 // pred_region
        _
      $region36: #{tpu_custom_call.1} parent=11 // pred_fallthru
        _
    $region12: #{tpu_custom_call.1} parent=5 // pred_fallthru
      _
    %p224 = scmp.lt.s32.totalorder %s13, 2
    // Predicated region
    $region37: #{tpu_custom_call.1} parent=5 // pred_check
      %p225 = pneg %p224
    $region38: #{tpu_custom_call.1} parent=5 // pred_check_branch
      %227 = sbr.rel (%p225) target = $region40
    $region39: #{tpu_custom_call.1} parent=5 // pred_region
      // Predicated region
      $region41: #{tpu_custom_call.1} parent=39 // pred_check
        %p228 = pneg %p33
      $region42: #{tpu_custom_call.1} parent=39 // pred_check_branch
        %230 = sbr.rel (%p228) target = $region44
      $region43: #{tpu_custom_call.1} parent=39 // pred_region
        %s231 = smul.u32 8, %s13
        %p232 = scmp.lt.s32.totalorder %s231, 15
        %s233 = scalar_select %p232, %s231, 15
        %s234 = smul.addr %s233, 8
        %s235 = scalar_lea.vmem %s0, %s234
        %s236 = smul.u32 8, %s13
      $region44: #{tpu_custom_call.1} parent=39 // pred_fallthru
        _
    $region40: #{tpu_custom_call.1} parent=5 // pred_fallthru
      _
    %p237 = scmp.le.s32.totalorder 1, %s13
    %p238 = scmp.lt.s32.totalorder %s13, 3
    %p239 = pnand %p237, %p238
    %p240 = pneg %p239
    // Predicated region
    $region45: #{tpu_custom_call.1} parent=5 // pred_check
      _
    $region46: #{tpu_custom_call.1} parent=5 // pred_check_branch
      %242 = sbr.rel (%p239) target = $region48
    $region47: #{tpu_custom_call.1} parent=5 // pred_region
      %s243 = ssub.s32 %s13, 1
      %s244 = smul.u32 8, %s18
      %p245 = scmp.lt.s32.totalorder %s244, 15
      %s246 = scalar_select %p245, %s244, 15
      %s247 = smul.addr %s246, 8
      %s248 = scalar_lea.vmem %s0, %s247
      %p249 = pneg %p39
      %p250 = pneg %p36
      %p251 = pneg %p60
      %p252 = pneg %p57
      %p253 = pneg %p81
      %p254 = pneg %p78
      %p255 = pneg %p102
      %p256 = pneg %p99
      %p257 = pneg %p123
      %p258 = pneg %p120
      %p259 = pneg %p144
      %p260 = pneg %p141
      %p261 = pneg %p165
      %p262 = pneg %p162
      %p263 = pneg %p191
      %p264 = pneg %p188
      %s265 = smul.u32 8, %s18
      %p266 = scmp.lt.s32.totalorder %s265, 15
      %s267 = scalar_select %p266, %s265, 15
      %s268 = smul.addr %s267, 8
      %s269 = scalar_lea.vmem %s7, %s268
      %s270 = smul.u32 8, %s18
      %p271 = scmp.lt.s32.totalorder %s270, 15
      %s272 = scalar_select %p271, %s270, 15
      %s273 = smul.addr %s272, 8
      %s274 = scalar_lea.vmem %s0, %s273
      %s275 = smul.u32 8, %s18
      %s276 = smul.u32 8, %s18
      %p277 = scmp.lt.s32.totalorder %s276, 15
      %s278 = scalar_select %p277, %s276, 15
      %s279 = smul.addr %s278, 8
      %s280 = scalar_lea.vmem %s7, %s279
      %s281 = smul.u32 8, %s18
      %vm282 = vcmask 31744
      %283 = vst.msk [vmem:[#allocation2] sm:$0xff] %vm282, 0.0
      %284 = vst.msk [vmem:[#allocation2 + $0x8] sm:$0xff] %vm282, 0.0
      %285 = vst.msk [vmem:[#allocation2 + $0x50] sm:$0xff] %vm282, 0.0
      %286 = vst.msk [vmem:[#allocation2 + $0x58] sm:$0xff] %vm282, 0.0
      %v287 = vld [vmem:[%s274] sm:$0xff]
      %v288 = vld [vmem:[%s274 + $0x8] sm:$0xff]
      %v289 = vld [vmem:[%s274 + $0x10] sm:$0xff]
      %v290 = vld [vmem:[%s274 + $0x18] sm:$0xff]
      %v291 = vld [vmem:[%s274 + $0x20] sm:$0xff]
      %v292 = vld [vmem:[%s274 + $0x28] sm:$0xff]
      %v293 = vld [vmem:[%s274 + $0x30] sm:$0xff]
      %v294 = vld [vmem:[%s274 + $0x38] sm:$0xff]
      %v295 = vld [vmem:[%s1] sm:$0xff]
      %v296 = vld [vmem:[%s2] sm:$0x1]
      %v298 = vlaneseq
      %v299 = vshrl.u32 %v298, 7
      %v300 = vsub.s32 0, %v299
      %v301 = vrot.slane %v296, %v300
      %vm303 = vcmask 64512
      %v305 = vsel %vm303, %v287, 0
      %v308 = vsel %vm303, %v288, 0
      %v311 = vsel %vm303, %v289, 0
      %v314 = vsel %vm303, %v290, 0
      %v317 = vsel %vm303, %v291, 0
      %v320 = vsel %vm303, %v292, 0
      %v323 = vsel %vm303, %v293, 0
      %v326 = vsel %vm303, %v294, 0
      %328 = vmatprep.subr.mxu0 0.0
      %329 = vmatpush1.msra.mxu0 %v295
      %330 = vmatprep.subr.mxu0 0.0
      %331 = vmatpush1.msra.mxu0 0.0
      %332 = vmatprep.subr.mxu0 0.0
      %333 = vmatpush1.msra.mxu0 0.0
      %334 = vmatprep.subr.mxu0 0.0
      %335 = vmatpush1.msra.mxu0 0.0
      %336 = vmatprep.subr.mxu0 0.0
      %337 = vmatpush1.msra.mxu0 0.0
      %338 = vmatprep.subr.mxu0 0.0
      %339 = vmatpush1.msra.mxu0 0.0
      %340 = vmatprep.subr.mxu0 0.0
      %341 = vmatpush1.msra.mxu0 0.0
      %342 = vmatprep.subr.mxu0 0.0
      %343 = vmatpush1.msra.mxu0 0.0
      %344 = vmatprep.subr.mxu0 0.0
      %345 = vmatpush1.msra.mxu0 0.0
      %346 = vmatprep.subr.mxu0 0.0
      %347 = vmatpush1.msra.mxu0 0.0
      %348 = vmatprep.subr.mxu0 0.0
      %349 = vmatpush1.msra.mxu0 0.0
      %350 = vmatprep.subr.mxu0 0.0
      %351 = vmatpush1.msra.mxu0 0.0
      %352 = vmatprep.subr.mxu0 0.0
      %353 = vmatpush1.msra.mxu0 0.0
      %354 = vmatprep.subr.mxu0 0.0
      %355 = vmatpush1.msra.mxu0 0.0
      %356 = vmatprep.subr.mxu0 0.0
      %357 = vmatpush1.msra.mxu0 0.0
      %358 = vmatprep.subr.mxu0 0.0
      %359 = vmatpush1.msra.mxu0 0.0
      %360 = vmatprep.subr.mxu0 0.0
      %361 = vmatpush1.msra.mxu0 0.0
      %362 = vmatprep.subr.mxu0 0.0
      %363 = vmatpush1.msra.mxu0 0.0
      %364 = vmatprep.subr.mxu0 0.0
      %365 = vmatpush1.msra.mxu0 0.0
      %366 = vmatprep.subr.mxu0 0.0
      %367 = vmatpush1.msra.mxu0 0.0
      %368 = vmatprep.subr.mxu0 0.0
      %369 = vmatpush1.msra.mxu0 0.0
      %370 = vmatprep.subr.mxu0 0.0
      %371 = vmatpush1.msra.mxu0 0.0
      %372 = vmatprep.subr.mxu0 0.0
      %373 = vmatpush1.msra.mxu0 0.0
      %374 = vmatprep.subr.mxu0 0.0
      %375 = vmatpush1.msra.mxu0 0.0
      %376 = vmatprep.subr.mxu0 0.0
      %377 = vmatpush1.msra.mxu0 0.0
      %378 = vmatprep.subr.mxu0 0.0
      %379 = vmatpush1.msra.mxu0 0.0
      %380 = vmatprep.subr.mxu0 0.0
      %381 = vmatpush1.msra.mxu0 0.0
      %382 = vmatprep.subr.mxu0 0.0
      %383 = vmatpush1.msra.mxu0 0.0
      %384 = vmatprep.subr.mxu0 0.0
      %385 = vmatpush1.msra.mxu0 0.0
      %386 = vmatprep.subr.mxu0 0.0
      %387 = vmatpush1.msra.mxu0 0.0
      %388 = vmatprep.subr.mxu0 0.0
      %389 = vmatpush1.msra.mxu0 0.0
      %390 = vmatprep.subr.mxu0 0.0
      %391 = vmatpush1.msra.mxu0 0.0
      %392 = vmatprep.mubr.f32.mxu0 0.0
      %393 = vmatmul.mubr.f32.gmra.mrb[0].mxu0 %v305
      %v394 = vpop.f32.mrb[0].mxu0
      %v395 = vadd.f32 %v301, %v394
      %v396 = vpop.f32.mrb[0].mxu0
      %397 = vmatprep.mubr.f32.mxu0 0.0
      %398 = vmatmul.mubr.f32.gmra.mrb[0].mxu0 %v308
      %v399 = vpop.f32.mrb[0].mxu0
      %v400 = vadd.f32 %v301, %v399
      %v401 = vpop.f32.mrb[0].mxu0
      %402 = vmatprep.mubr.f32.mxu0 0.0
      %403 = vmatmul.mubr.f32.gmra.mrb[0].mxu0 %v311
      %v404 = vpop.f32.mrb[0].mxu0
      %v405 = vadd.f32 %v301, %v404
      %v406 = vpop.f32.mrb[0].mxu0
      %407 = vmatprep.mubr.f32.mxu0 0.0
      %408 = vmatmul.mubr.f32.gmra.mrb[0].mxu0 %v314
      %v409 = vpop.f32.mrb[0].mxu0
      %v410 = vadd.f32 %v301, %v409
      %v411 = vpop.f32.mrb[0].mxu0
      %412 = vmatprep.mubr.f32.mxu0 0.0
      %413 = vmatmul.mubr.f32.gmra.mrb[0].mxu0 %v317
      %v414 = vpop.f32.mrb[0].mxu0
      %v415 = vadd.f32 %v301, %v414
      %v416 = vpop.f32.mrb[0].mxu0
      %417 = vmatprep.mubr.f32.mxu0 0.0
      %418 = vmatmul.mubr.f32.gmra.mrb[0].mxu0 %v320
      %v419 = vpop.f32.mrb[0].mxu0
      %v420 = vadd.f32 %v301, %v419
      %v421 = vpop.f32.mrb[0].mxu0
      %422 = vmatprep.mubr.f32.mxu0 0.0
      %423 = vmatmul.mubr.f32.gmra.mrb[0].mxu0 %v323
      %v424 = vpop.f32.mrb[0].mxu0
      %v425 = vadd.f32 %v301, %v424
      %v426 = vpop.f32.mrb[0].mxu0
      %427 = vmatprep.mubr.f32.mxu0 0.0
      %428 = vmatmul.mubr.f32.gmra.mrb[0].mxu0 %v326
      %v429 = vpop.f32.mrb[0].mxu0
      %v430 = vadd.f32 %v301, %v429
      %v431 = vpop.f32.mrb[0].mxu0
      %432 = vdwg.mxu0
      %v433 = vmax.f32 %v395, 0.0
      %v434 = vmax.f32 %v400, 0.0
      %v435 = vmax.f32 %v405, 0.0
      %v436 = vmax.f32 %v410, 0.0
      %v437 = vmax.f32 %v415, 0.0
      %v438 = vmax.f32 %v420, 0.0
      %v439 = vmax.f32 %v425, 0.0
      %v440 = vmax.f32 %v430, 0.0
      %441 = vst.msk [vmem:[#allocation2 + $0x10] sm:$0xff] %vm282, %v433
      %442 = vst.msk [vmem:[#allocation2 + $0x18] sm:$0xff] %vm282, %v434
      %443 = vst.msk [vmem:[#allocation2 + $0x20] sm:$0xff] %vm282, %v435
      %444 = vst.msk [vmem:[#allocation2 + $0x28] sm:$0xff] %vm282, %v436
      %445 = vst.msk [vmem:[#allocation2 + $0x30] sm:$0xff] %vm282, %v437
      %446 = vst.msk [vmem:[#allocation2 + $0x38] sm:$0xff] %vm282, %v438
      %447 = vst.msk [vmem:[#allocation2 + $0x40] sm:$0xff] %vm282, %v439
      %448 = vst.msk [vmem:[#allocation2 + $0x48] sm:$0xff] %vm282, %v440
      %v449 = vld [vmem:[%s5] sm:$0xff]
      %v450 = vld [vmem:[%s5 + $0x8] sm:$0xff]
      %v451 = vld [vmem:[%s5 + $0x10] sm:$0xff]
      %v452 = vld [vmem:[%s5 + $0x18] sm:$0xff]
      %v453 = vld [vmem:[%s5 + $0x20] sm:$0xff]
      %v454 = vld [vmem:[%s5 + $0x28] sm:$0xff]
      %v455 = vld [vmem:[%s5 + $0x30] sm:$0xff]
      %v456 = vld [vmem:[%s5 + $0x38] sm:$0xff]
      %457 = vset.pattern.permute.xlu0 0
      %458 = vperm.xlu0 %457, %v449
      %v459 = vpop.permute.xlu0 %458
      %460 = vset.pattern.permute.xlu0 0
      %461 = vperm.xlu0 %460, %v450
      %v462 = vpop.permute.xlu0 %461
      %463 = vset.pattern.permute.xlu0 0
      %464 = vperm.xlu0 %463, %v451
      %v465 = vpop.permute.xlu0 %464
      %466 = vset.pattern.permute.xlu0 0
      %467 = vperm.xlu0 %466, %v452
      %v468 = vpop.permute.xlu0 %467
      %469 = vset.pattern.permute.xlu0 0
      %470 = vperm.xlu0 %469, %v453
      %v471 = vpop.permute.xlu0 %470
      %472 = vset.pattern.permute.xlu0 0
      %473 = vperm.xlu0 %472, %v454
      %v474 = vpop.permute.xlu0 %473
      %475 = vset.pattern.permute.xlu0 0
      %476 = vperm.xlu0 %475, %v455
      %v477 = vpop.permute.xlu0 %476
      %478 = vset.pattern.permute.xlu0 0
      %479 = vperm.xlu0 %478, %v456
      %v480 = vpop.permute.xlu0 %479
      %v481 = vld [vmem:[%s6] sm:$0xff]
      %v482 = vld [vmem:[%s6 + $0x8] sm:$0xff]
      %v483 = vld [vmem:[%s6 + $0x10] sm:$0xff]
      %v484 = vld [vmem:[%s6 + $0x18] sm:$0xff]
      %v485 = vld [vmem:[%s6 + $0x20] sm:$0xff]
      %v486 = vld [vmem:[%s6 + $0x28] sm:$0xff]
      %v487 = vld [vmem:[%s6 + $0x30] sm:$0xff]
      %v488 = vld [vmem:[%s6 + $0x38] sm:$0xff]
      %489 = vset.pattern.permute.xlu0 0
      %490 = vperm.xlu0 %489, %v481
      %v491 = vpop.permute.xlu0 %490
      %492 = vset.pattern.permute.xlu0 0
      %493 = vperm.xlu0 %492, %v482
      %v494 = vpop.permute.xlu0 %493
      %495 = vset.pattern.permute.xlu0 0
      %496 = vperm.xlu0 %495, %v483
      %v497 = vpop.permute.xlu0 %496
      %498 = vset.pattern.permute.xlu0 0
      %499 = vperm.xlu0 %498, %v484
      %v500 = vpop.permute.xlu0 %499
      %501 = vset.pattern.permute.xlu0 0
      %502 = vperm.xlu0 %501, %v485
      %v503 = vpop.permute.xlu0 %502
      %504 = vset.pattern.permute.xlu0 0
      %505 = vperm.xlu0 %504, %v486
      %v506 = vpop.permute.xlu0 %505
      %507 = vset.pattern.permute.xlu0 0
      %508 = vperm.xlu0 %507, %v487
      %v509 = vpop.permute.xlu0 %508
      %510 = vset.pattern.permute.xlu0 0
      %511 = vperm.xlu0 %510, %v488
      %v512 = vpop.permute.xlu0 %511
      %vm513 = vcmp.ge.s32.totalorder %v459, 1
      %vm514 = vcmp.ge.s32.totalorder %v462, 1
      %vm515 = vcmp.ge.s32.totalorder %v465, 1
      %vm516 = vcmp.ge.s32.totalorder %v468, 1
      %vm517 = vcmp.ge.s32.totalorder %v471, 1
      %vm518 = vcmp.ge.s32.totalorder %v474, 1
      %vm519 = vcmp.ge.s32.totalorder %v477, 1
      %vm520 = vcmp.ge.s32.totalorder %v480, 1
      %vm521 = vcmp.le.s32.totalorder %v459, 6
      %vm522 = vcmp.le.s32.totalorder %v462, 6
      %vm523 = vcmp.le.s32.totalorder %v465, 6
      %vm524 = vcmp.le.s32.totalorder %v468, 6
      %vm525 = vcmp.le.s32.totalorder %v471, 6
      %vm526 = vcmp.le.s32.totalorder %v474, 6
      %vm527 = vcmp.le.s32.totalorder %v477, 6
      %vm528 = vcmp.le.s32.totalorder %v480, 6
      %vm529 = vcmp.ge.s32.totalorder %v491, 1
      %vm530 = vcmp.ge.s32.totalorder %v494, 1
      %vm531 = vcmp.ge.s32.totalorder %v497, 1
      %vm532 = vcmp.ge.s32.totalorder %v500, 1
      %vm533 = vcmp.ge.s32.totalorder %v503, 1
      %vm534 = vcmp.ge.s32.totalorder %v506, 1
      %vm535 = vcmp.ge.s32.totalorder %v509, 1
      %vm536 = vcmp.ge.s32.totalorder %v512, 1
      %vm537 = vcmp.le.s32.totalorder %v491, 6
      %vm538 = vcmp.le.s32.totalorder %v494, 6
      %vm539 = vcmp.le.s32.totalorder %v497, 6
      %vm540 = vcmp.le.s32.totalorder %v500, 6
      %vm541 = vcmp.le.s32.totalorder %v503, 6
      %vm542 = vcmp.le.s32.totalorder %v506, 6
      %vm543 = vcmp.le.s32.totalorder %v509, 6
      %vm544 = vcmp.le.s32.totalorder %v512, 6
      %v545 = vld [vmem:[#allocation2 + $0x7] sm:$0xff]
      %v546 = vld [vmem:[#allocation2 + $0xf] sm:$0xff]
      %v547 = vld [vmem:[#allocation2 + $0x17] sm:$0xff]
      %v548 = vld [vmem:[#allocation2 + $0x1f] sm:$0xff]
      %v549 = vld [vmem:[#allocation2 + $0x27] sm:$0xff]
      %v550 = vld [vmem:[#allocation2 + $0x2f] sm:$0xff]
      %v551 = vld [vmem:[#allocation2 + $0x37] sm:$0xff]
      %v552 = vld [vmem:[#allocation2 + $0x3f] sm:$0xff]
      %vm553 = vmand %vm513, %vm529
      %vm554 = vmand %vm514, %vm530
      %vm555 = vmand %vm515, %vm531
      %vm556 = vmand %vm516, %vm532
      %vm557 = vmand %vm517, %vm533
      %vm558 = vmand %vm518, %vm534
      %vm559 = vmand %vm519, %vm535
      %vm560 = vmand %vm520, %vm536
      %v561 = vsel %vm553, %v545, 0.0
      %v562 = vsel %vm554, %v546, 0.0
      %v563 = vsel %vm555, %v547, 0.0
      %v564 = vsel %vm556, %v548, 0.0
      %v565 = vsel %vm557, %v549, 0.0
      %v566 = vsel %vm558, %v550, 0.0
      %v567 = vsel %vm559, %v551, 0.0
      %v568 = vsel %vm560, %v552, 0.0
      %v569 = vld [vmem:[#allocation2 + $0x8] sm:$0xff]
      %v570 = vld [vmem:[#allocation2 + $0x10] sm:$0xff]
      %v571 = vld [vmem:[#allocation2 + $0x18] sm:$0xff]
      %v572 = vld [vmem:[#allocation2 + $0x20] sm:$0xff]
      %v573 = vld [vmem:[#allocation2 + $0x28] sm:$0xff]
      %v574 = vld [vmem:[#allocation2 + $0x30] sm:$0xff]
      %v575 = vld [vmem:[#allocation2 + $0x38] sm:$0xff]
      %v576 = vld [vmem:[#allocation2 + $0x40] sm:$0xff]
      %v577 = vsel %vm513, %v569, 0.0
      %v578 = vsel %vm514, %v570, 0.0
      %v579 = vsel %vm515, %v571, 0.0
      %v580 = vsel %vm516, %v572, 0.0
      %v581 = vsel %vm517, %v573, 0.0
      %v582 = vsel %vm518, %v574, 0.0
      %v583 = vsel %vm519, %v575, 0.0
      %v584 = vsel %vm520, %v576, 0.0
      %v585 = vld [vmem:[#allocation2 + $0x9] sm:$0xff]
      %v586 = vld [vmem:[#allocation2 + $0x11] sm:$0xff]
      %v587 = vld [vmem:[#allocation2 + $0x19] sm:$0xff]
      %v588 = vld [vmem:[#allocation2 + $0x21] sm:$0xff]
      %v589 = vld [vmem:[#allocation2 + $0x29] sm:$0xff]
      %v590 = vld [vmem:[#allocation2 + $0x31] sm:$0xff]
      %v591 = vld [vmem:[#allocation2 + $0x39] sm:$0xff]
      %v592 = vld [vmem:[#allocation2 + $0x41] sm:$0xff]
      %vm593 = vmand %vm513, %vm537
      %vm594 = vmand %vm514, %vm538
      %vm595 = vmand %vm515, %vm539
      %vm596 = vmand %vm516, %vm540
      %vm597 = vmand %vm517, %vm541
      %vm598 = vmand %vm518, %vm542
      %vm599 = vmand %vm519, %vm543
      %vm600 = vmand %vm520, %vm544
      %v601 = vsel %vm593, %v585, 0.0
      %v602 = vsel %vm594, %v586, 0.0
      %v603 = vsel %vm595, %v587, 0.0
      %v604 = vsel %vm596, %v588, 0.0
      %v605 = vsel %vm597, %v589, 0.0
      %v606 = vsel %vm598, %v590, 0.0
      %v607 = vsel %vm599, %v591, 0.0
      %v608 = vsel %vm600, %v592, 0.0
      %v609 = vld [vmem:[#allocation2 + $0x47] sm:$0xff]
      %v610 = vsel %vm529, %v546, 0.0
      %v611 = vsel %vm530, %v547, 0.0
      %v612 = vsel %vm531, %v548, 0.0
      %v613 = vsel %vm532, %v549, 0.0
      %v614 = vsel %vm533, %v550, 0.0
      %v615 = vsel %vm534, %v551, 0.0
      %v616 = vsel %vm535, %v552, 0.0
      %v617 = vsel %vm536, %v609, 0.0
      %v618 = vld [vmem:[#allocation2 + $0x49] sm:$0xff]
      %v619 = vsel %vm537, %v586, 0.0
      %v620 = vsel %vm538, %v587, 0.0
      %v621 = vsel %vm539, %v588, 0.0
      %v622 = vsel %vm540, %v589, 0.0
      %v623 = vsel %vm541, %v590, 0.0
      %v624 = vsel %vm542, %v591, 0.0
      %v625 = vsel %vm543, %v592, 0.0
      %v626 = vsel %vm544, %v618, 0.0
      %v627 = vld [vmem:[#allocation2 + $0x4f] sm:$0xff]
      %vm628 = vmand %vm521, %vm529
      %vm629 = vmand %vm522, %vm530
      %vm630 = vmand %vm523, %vm531
      %vm631 = vmand %vm524, %vm532
      %vm632 = vmand %vm525, %vm533
      %vm633 = vmand %vm526, %vm534
      %vm634 = vmand %vm527, %vm535
      %vm635 = vmand %vm528, %vm536
      %v636 = vsel %vm628, %v547, 0.0
      %v637 = vsel %vm629, %v548, 0.0
      %v638 = vsel %vm630, %v549, 0.0
      %v639 = vsel %vm631, %v550, 0.0
      %v640 = vsel %vm632, %v551, 0.0
      %v641 = vsel %vm633, %v552, 0.0
      %v642 = vsel %vm634, %v609, 0.0
      %v643 = vsel %vm635, %v627, 0.0
      %v644 = vld [vmem:[#allocation2 + $0x48] sm:$0xff]
      %v645 = vld [vmem:[#allocation2 + $0x50] sm:$0xff]
      %v646 = vsel %vm521, %v571, 0.0
      %v647 = vsel %vm522, %v572, 0.0
      %v648 = vsel %vm523, %v573, 0.0
      %v649 = vsel %vm524, %v574, 0.0
      %v650 = vsel %vm525, %v575, 0.0
      %v651 = vsel %vm526, %v576, 0.0
      %v652 = vsel %vm527, %v644, 0.0
      %v653 = vsel %vm528, %v645, 0.0
      %v654 = vld [vmem:[#allocation2 + $0x51] sm:$0xff]
      %vm655 = vmand %vm521, %vm537
      %vm656 = vmand %vm522, %vm538
      %vm657 = vmand %vm523, %vm539
      %vm658 = vmand %vm524, %vm540
      %vm659 = vmand %vm525, %vm541
      %vm660 = vmand %vm526, %vm542
      %vm661 = vmand %vm527, %vm543
      %vm662 = vmand %vm528, %vm544
      %v663 = vsel %vm655, %v587, 0.0
      %v664 = vsel %vm656, %v588, 0.0
      %v665 = vsel %vm657, %v589, 0.0
      %v666 = vsel %vm658, %v590, 0.0
      %v667 = vsel %vm659, %v591, 0.0
      %v668 = vsel %vm660, %v592, 0.0
      %v669 = vsel %vm661, %v618, 0.0
      %v670 = vsel %vm662, %v654, 0.0
      %679 = vrot.lane.b32.xlu0 %v577, 4
      %v680 = vpop.permute.xlu0 %679
      %681 = vrot.lane.b32.xlu0 %v578, 4
      %v682 = vpop.permute.xlu0 %681
      %683 = vrot.lane.b32.xlu0 %v579, 4
      %v684 = vpop.permute.xlu0 %683
      %685 = vrot.lane.b32.xlu0 %v580, 4
      %v686 = vpop.permute.xlu0 %685
      %687 = vrot.lane.b32.xlu0 %v581, 4
      %v688 = vpop.permute.xlu0 %687
      %689 = vrot.lane.b32.xlu0 %v582, 4
      %v690 = vpop.permute.xlu0 %689
      %691 = vrot.lane.b32.xlu0 %v583, 4
      %v692 = vpop.permute.xlu0 %691
      %693 = vrot.lane.b32.xlu0 %v584, 4
      %v694 = vpop.permute.xlu0 %693
      %711 = vrot.lane.b32.xlu0 %v601, 8
      %v712 = vpop.permute.xlu0 %711
      %713 = vrot.lane.b32.xlu0 %v602, 8
      %v714 = vpop.permute.xlu0 %713
      %715 = vrot.lane.b32.xlu0 %v603, 8
      %v716 = vpop.permute.xlu0 %715
      %717 = vrot.lane.b32.xlu0 %v604, 8
      %v718 = vpop.permute.xlu0 %717
      %719 = vrot.lane.b32.xlu0 %v605, 8
      %v720 = vpop.permute.xlu0 %719
      %721 = vrot.lane.b32.xlu0 %v606, 8
      %v722 = vpop.permute.xlu0 %721
      %723 = vrot.lane.b32.xlu0 %v607, 8
      %v724 = vpop.permute.xlu0 %723
      %725 = vrot.lane.b32.xlu0 %v608, 8
      %v726 = vpop.permute.xlu0 %725
      %743 = vrot.lane.b32.xlu0 %v610, 12
      %v744 = vpop.permute.xlu0 %743
      %745 = vrot.lane.b32.xlu0 %v611, 12
      %v746 = vpop.permute.xlu0 %745
      %747 = vrot.lane.b32.xlu0 %v612, 12
      %v748 = vpop.permute.xlu0 %747
      %749 = vrot.lane.b32.xlu0 %v613, 12
      %v750 = vpop.permute.xlu0 %749
      %751 = vrot.lane.b32.xlu0 %v614, 12
      %v752 = vpop.permute.xlu0 %751
      %753 = vrot.lane.b32.xlu0 %v615, 12
      %v754 = vpop.permute.xlu0 %753
      %755 = vrot.lane.b32.xlu0 %v616, 12
      %v756 = vpop.permute.xlu0 %755
      %757 = vrot.lane.b32.xlu0 %v617, 12
      %v758 = vpop.permute.xlu0 %757
      %775 = vrot.lane.b32.xlu0 %v433, 16
      %v776 = vpop.permute.xlu0 %775
      %777 = vrot.lane.b32.xlu0 %v434, 16
      %v778 = vpop.permute.xlu0 %777
      %779 = vrot.lane.b32.xlu0 %v435, 16
      %v780 = vpop.permute.xlu0 %779
      %781 = vrot.lane.b32.xlu0 %v436, 16
      %v782 = vpop.permute.xlu0 %781
      %783 = vrot.lane.b32.xlu0 %v437, 16
      %v784 = vpop.permute.xlu0 %783
      %785 = vrot.lane.b32.xlu0 %v438, 16
      %v786 = vpop.permute.xlu0 %785
      %787 = vrot.lane.b32.xlu0 %v439, 16
      %v788 = vpop.permute.xlu0 %787
      %789 = vrot.lane.b32.xlu0 %v440, 16
      %v790 = vpop.permute.xlu0 %789
      %807 = vrot.lane.b32.xlu0 %v619, 20
      %v808 = vpop.permute.xlu0 %807
      %809 = vrot.lane.b32.xlu0 %v620, 20
      %v810 = vpop.permute.xlu0 %809
      %811 = vrot.lane.b32.xlu0 %v621, 20
      %v812 = vpop.permute.xlu0 %811
      %813 = vrot.lane.b32.xlu0 %v622, 20
      %v814 = vpop.permute.xlu0 %813
      %815 = vrot.lane.b32.xlu0 %v623, 20
      %v816 = vpop.permute.xlu0 %815
      %817 = vrot.lane.b32.xlu0 %v624, 20
      %v818 = vpop.permute.xlu0 %817
      %819 = vrot.lane.b32.xlu0 %v625, 20
      %v820 = vpop.permute.xlu0 %819
      %821 = vrot.lane.b32.xlu0 %v626, 20
      %v822 = vpop.permute.xlu0 %821
      %839 = vrot.lane.b32.xlu0 %v636, 24
      %v840 = vpop.permute.xlu0 %839
      %841 = vrot.lane.b32.xlu0 %v637, 24
      %v842 = vpop.permute.xlu0 %841
      %843 = vrot.lane.b32.xlu0 %v638, 24
      %v844 = vpop.permute.xlu0 %843
      %845 = vrot.lane.b32.xlu0 %v639, 24
      %v846 = vpop.permute.xlu0 %845
      %847 = vrot.lane.b32.xlu0 %v640, 24
      %v848 = vpop.permute.xlu0 %847
      %849 = vrot.lane.b32.xlu0 %v641, 24
      %v850 = vpop.permute.xlu0 %849
      %851 = vrot.lane.b32.xlu0 %v642, 24
      %v852 = vpop.permute.xlu0 %851
      %853 = vrot.lane.b32.xlu0 %v643, 24
      %v854 = vpop.permute.xlu0 %853
      %871 = vrot.lane.b32.xlu0 %v646, 28
      %v872 = vpop.permute.xlu0 %871
      %873 = vrot.lane.b32.xlu0 %v647, 28
      %v874 = vpop.permute.xlu0 %873
      %875 = vrot.lane.b32.xlu0 %v648, 28
      %v876 = vpop.permute.xlu0 %875
      %877 = vrot.lane.b32.xlu0 %v649, 28
      %v878 = vpop.permute.xlu0 %877
      %879 = vrot.lane.b32.xlu0 %v650, 28
      %v880 = vpop.permute.xlu0 %879
      %881 = vrot.lane.b32.xlu0 %v651, 28
      %v882 = vpop.permute.xlu0 %881
      %883 = vrot.lane.b32.xlu0 %v652, 28
      %v884 = vpop.permute.xlu0 %883
      %885 = vrot.lane.b32.xlu0 %v653, 28
      %v886 = vpop.permute.xlu0 %885
      %903 = vrot.lane.b32.xlu0 %v663, 32
      %v904 = vpop.permute.xlu0 %903
      %905 = vrot.lane.b32.xlu0 %v664, 32
      %v906 = vpop.permute.xlu0 %905
      %907 = vrot.lane.b32.xlu0 %v665, 32
      %v908 = vpop.permute.xlu0 %907
      %909 = vrot.lane.b32.xlu0 %v666, 32
      %v910 = vpop.permute.xlu0 %909
      %911 = vrot.lane.b32.xlu0 %v667, 32
      %v912 = vpop.permute.xlu0 %911
      %913 = vrot.lane.b32.xlu0 %v668, 32
      %v914 = vpop.permute.xlu0 %913
      %915 = vrot.lane.b32.xlu0 %v669, 32
      %v916 = vpop.permute.xlu0 %915
      %917 = vrot.lane.b32.xlu0 %v670, 32
      %v918 = vpop.permute.xlu0 %917
      %v927 = vsel %vm282, %v561, %v680
      %v928 = vsel %vm282, %v562, %v682
      %v929 = vsel %vm282, %v563, %v684
      %v930 = vsel %vm282, %v564, %v686
      %v931 = vsel %vm282, %v565, %v688
      %v932 = vsel %vm282, %v566, %v690
      %v933 = vsel %vm282, %v567, %v692
      %v934 = vsel %vm282, %v568, %v694
      %v935 = vsel %vm303, %v927, %v712
      %v936 = vsel %vm303, %v928, %v714
      %v937 = vsel %vm303, %v929, %v716
      %v938 = vsel %vm303, %v930, %v718
      %v939 = vsel %vm303, %v931, %v720
      %v940 = vsel %vm303, %v932, %v722
      %v941 = vsel %vm303, %v933, %v724
      %v942 = vsel %vm303, %v934, %v726
      %vm943 = vcmask 97280
      %v944 = vsel %vm943, %v935, %v744
      %v945 = vsel %vm943, %v936, %v746
      %v946 = vsel %vm943, %v937, %v748
      %v947 = vsel %vm943, %v938, %v750
      %v948 = vsel %vm943, %v939, %v752
      %v949 = vsel %vm943, %v940, %v754
      %v950 = vsel %vm943, %v941, %v756
      %v951 = vsel %vm943, %v942, %v758
      %vm952 = vcmask 130048
      %v953 = vsel %vm952, %v944, %v776
      %v954 = vsel %vm952, %v945, %v778
      %v955 = vsel %vm952, %v946, %v780
      %v956 = vsel %vm952, %v947, %v782
      %v957 = vsel %vm952, %v948, %v784
      %v958 = vsel %vm952, %v949, %v786
      %v959 = vsel %vm952, %v950, %v788
      %v960 = vsel %vm952, %v951, %v790
      %vm961 = vcmask 162816
      %v962 = vsel %vm961, %v953, %v808
      %v963 = vsel %vm961, %v954, %v810
      %v964 = vsel %vm961, %v955, %v812
      %v965 = vsel %vm961, %v956, %v814
      %v966 = vsel %vm961, %v957, %v816
      %v967 = vsel %vm961, %v958, %v818
      %v968 = vsel %vm961, %v959, %v820
      %v969 = vsel %vm961, %v960, %v822
      %vm970 = vcmask 195584
      %v971 = vsel %vm970, %v962, %v840
      %v972 = vsel %vm970, %v963, %v842
      %v973 = vsel %vm970, %v964, %v844
      %v974 = vsel %vm970, %v965, %v846
      %v975 = vsel %vm970, %v966, %v848
      %v976 = vsel %vm970, %v967, %v850
      %v977 = vsel %vm970, %v968, %v852
      %v978 = vsel %vm970, %v969, %v854
      %vm979 = vcmask 228352
      %v980 = vsel %vm979, %v971, %v872
      %v981 = vsel %vm979, %v972, %v874
      %v982 = vsel %vm979, %v973, %v876
      %v983 = vsel %vm979, %v974, %v878
      %v984 = vsel %vm979, %v975, %v880
      %v985 = vsel %vm979, %v976, %v882
      %v986 = vsel %vm979, %v977, %v884
      %v987 = vsel %vm979, %v978, %v886
      %vm988 = vcmask 261120
      %v989 = vsel %vm988, %v980, %v904
      %v990 = vsel %vm988, %v981, %v906
      %v991 = vsel %vm988, %v982, %v908
      %v992 = vsel %vm988, %v983, %v910
      %v993 = vsel %vm988, %v984, %v912
      %v994 = vsel %vm988, %v985, %v914
      %v995 = vsel %vm988, %v986, %v916
      %v996 = vsel %vm988, %v987, %v918
      %v997 = vld [vmem:[%s3] sm:$0xff]
      %v998 = vld [vmem:[%s3 + $0x8] sm:$0xff]
      %v999 = vld [vmem:[%s3 + $0x10] sm:$0xff]
      %v1000 = vld [vmem:[%s3 + $0x18] sm:$0xff]
      %v1001 = vld [vmem:[%s3 + $0x20] sm:$0xf]
      %v1002 = vld [vmem:[%s4] sm:$0x1]
      %v1004 = vlaneseq
      %v1005 = vshrl.u32 %v1004, 7
      %v1006 = vsub.s32 0, %v1005
      %v1007 = vrot.slane %v1002, %v1006
      %vm1009 = vcmask 293888
      %v1011 = vsel %vm1009, %v989, 0
      %v1014 = vsel %vm1009, %v990, 0
      %v1017 = vsel %vm1009, %v991, 0
      %v1020 = vsel %vm1009, %v992, 0
      %v1023 = vsel %vm1009, %v993, 0
      %v1026 = vsel %vm1009, %v994, 0
      %v1029 = vsel %vm1009, %v995, 0
      %v1032 = vsel %vm1009, %v996, 0
      %vm1034 = vcmask 1043456
      %v1036 = vsel %vm1034, %v1001, 0
      %1038 = vmatprep.subr.mxu0 0.0
      %1039 = vmatpush1.msra.mxu0 %v997
      %1040 = vmatprep.subr.mxu0 0.0
      %1041 = vmatpush1.msra.mxu0 %v998
      %1042 = vmatprep.subr.mxu0 0.0
      %1043 = vmatpush1.msra.mxu0 %v999
      %1044 = vmatprep.subr.mxu0 0.0
      %1045 = vmatpush1.msra.mxu0 %v1000
      %1046 = vmatprep.subr.mxu0 0.0
      %1047 = vmatpush1.msra.mxu0 %v1036
      %1048 = vmatprep.subr.mxu0 0.0
      %1049 = vmatpush1.msra.mxu0 0.0
      %1050 = vmatprep.subr.mxu0 0.0
      %1051 = vmatpush1.msra.mxu0 0.0
      %1052 = vmatprep.subr.mxu0 0.0
      %1053 = vmatpush1.msra.mxu0 0.0
      %1054 = vmatprep.subr.mxu0 0.0
      %1055 = vmatpush1.msra.mxu0 0.0
      %1056 = vmatprep.subr.mxu0 0.0
      %1057 = vmatpush1.msra.mxu0 0.0
      %1058 = vmatprep.subr.mxu0 0.0
      %1059 = vmatpush1.msra.mxu0 0.0
      %1060 = vmatprep.subr.mxu0 0.0
      %1061 = vmatpush1.msra.mxu0 0.0
      %1062 = vmatprep.subr.mxu0 0.0
      %1063 = vmatpush1.msra.mxu0 0.0
      %1064 = vmatprep.subr.mxu0 0.0
      %1065 = vmatpush1.msra.mxu0 0.0
      %1066 = vmatprep.subr.mxu0 0.0
      %1067 = vmatpush1.msra.mxu0 0.0
      %1068 = vmatprep.subr.mxu0 0.0
      %1069 = vmatpush1.msra.mxu0 0.0
      %1070 = vmatprep.subr.mxu0 0.0
      %1071 = vmatpush1.msra.mxu0 0.0
      %1072 = vmatprep.subr.mxu0 0.0
      %1073 = vmatpush1.msra.mxu0 0.0
      %1074 = vmatprep.subr.mxu0 0.0
      %1075 = vmatpush1.msra.mxu0 0.0
      %1076 = vmatprep.subr.mxu0 0.0
      %1077 = vmatpush1.msra.mxu0 0.0
      %1078 = vmatprep.subr.mxu0 0.0
      %1079 = vmatpush1.msra.mxu0 0.0
      %1080 = vmatprep.subr.mxu0 0.0
      %1081 = vmatpush1.msra.mxu0 0.0
      %1082 = vmatprep.subr.mxu0 0.0
      %1083 = vmatpush1.msra.mxu0 0.0
      %1084 = vmatprep.subr.mxu0 0.0
      %1085 = vmatpush1.msra.mxu0 0.0
      %1086 = vmatprep.subr.mxu0 0.0
      %1087 = vmatpush1.msra.mxu0 0.0
      %1088 = vmatprep.subr.mxu0 0.0
      %1089 = vmatpush1.msra.mxu0 0.0
      %1090 = vmatprep.subr.mxu0 0.0
      %1091 = vmatpush1.msra.mxu0 0.0
      %1092 = vmatprep.subr.mxu0 0.0
      %1093 = vmatpush1.msra.mxu0 0.0
      %1094 = vmatprep.subr.mxu0 0.0
      %1095 = vmatpush1.msra.mxu0 0.0
      %1096 = vmatprep.subr.mxu0 0.0
      %1097 = vmatpush1.msra.mxu0 0.0
      %1098 = vmatprep.subr.mxu0 0.0
      %1099 = vmatpush1.msra.mxu0 0.0
      %1100 = vmatprep.subr.mxu0 0.0
      %1101 = vmatpush1.msra.mxu0 0.0
      %1102 = vmatprep.mubr.f32.mxu0 0.0
      %1103 = vmatmul.mubr.f32.gmra.mrb[0].mxu0 %v1011
      %v1104 = vpop.f32.mrb[0].mxu0
      %v1105 = vadd.f32 %v1007, %v1104
      %v1106 = vpop.f32.mrb[0].mxu0
      %1107 = vmatprep.mubr.f32.mxu0 0.0
      %1108 = vmatmul.mubr.f32.gmra.mrb[0].mxu0 %v1014
      %v1109 = vpop.f32.mrb[0].mxu0
      %v1110 = vadd.f32 %v1007, %v1109
      %v1111 = vpop.f32.mrb[0].mxu0
      %1112 = vmatprep.mubr.f32.mxu0 0.0
      %1113 = vmatmul.mubr.f32.gmra.mrb[0].mxu0 %v1017
      %v1114 = vpop.f32.mrb[0].mxu0
      %v1115 = vadd.f32 %v1007, %v1114
      %v1116 = vpop.f32.mrb[0].mxu0
      %1117 = vmatprep.mubr.f32.mxu0 0.0
      %1118 = vmatmul.mubr.f32.gmra.mrb[0].mxu0 %v1020
      %v1119 = vpop.f32.mrb[0].mxu0
      %v1120 = vadd.f32 %v1007, %v1119
      %v1121 = vpop.f32.mrb[0].mxu0
      %1122 = vmatprep.mubr.f32.mxu0 0.0
      %1123 = vmatmul.mubr.f32.gmra.mrb[0].mxu0 %v1023
      %v1124 = vpop.f32.mrb[0].mxu0
      %v1125 = vadd.f32 %v1007, %v1124
      %v1126 = vpop.f32.mrb[0].mxu0
      %1127 = vmatprep.mubr.f32.mxu0 0.0
      %1128 = vmatmul.mubr.f32.gmra.mrb[0].mxu0 %v1026
      %v1129 = vpop.f32.mrb[0].mxu0
      %v1130 = vadd.f32 %v1007, %v1129
      %v1131 = vpop.f32.mrb[0].mxu0
      %1132 = vmatprep.mubr.f32.mxu0 0.0
      %1133 = vmatmul.mubr.f32.gmra.mrb[0].mxu0 %v1029
      %v1134 = vpop.f32.mrb[0].mxu0
      %v1135 = vadd.f32 %v1007, %v1134
      %v1136 = vpop.f32.mrb[0].mxu0
      %1137 = vmatprep.mubr.f32.mxu0 0.0
      %1138 = vmatmul.mubr.f32.gmra.mrb[0].mxu0 %v1032
      %v1139 = vpop.f32.mrb[0].mxu0
      %v1140 = vadd.f32 %v1007, %v1139
      %v1141 = vpop.f32.mrb[0].mxu0
      %1142 = vdwg.mxu0
      %v1143 = vmax.f32 %v1105, 0.0
      %v1144 = vmax.f32 %v1110, 0.0
      %v1145 = vmax.f32 %v1115, 0.0
      %v1146 = vmax.f32 %v1120, 0.0
      %v1147 = vmax.f32 %v1125, 0.0
      %v1148 = vmax.f32 %v1130, 0.0
      %v1149 = vmax.f32 %v1135, 0.0
      %v1150 = vmax.f32 %v1140, 0.0
      %1151 = vst.msk [vmem:[%s280] sm:$0xff] %vm952, %v1143
      %1152 = vst.msk [vmem:[%s280 + $0x8] sm:$0xff] %vm952, %v1144
      %1153 = vst.msk [vmem:[%s280 + $0x10] sm:$0xff] %vm952, %v1145
      %1154 = vst.msk [vmem:[%s280 + $0x18] sm:$0xff] %vm952, %v1146
      %1155 = vst.msk [vmem:[%s280 + $0x20] sm:$0xff] %vm952, %v1147
      %1156 = vst.msk [vmem:[%s280 + $0x28] sm:$0xff] %vm952, %v1148
      %1157 = vst.msk [vmem:[%s280 + $0x30] sm:$0xff] %vm952, %v1149
      %1158 = vst.msk [vmem:[%s280 + $0x38] sm:$0xff] %vm952, %v1150
      %s1159 = smul.u32 8, %s18
      %p1160 = scmp.lt.s32.totalorder %s1159, 15
      %s1161 = scalar_select %p1160, %s1159, 15
      %s1162 = smul.addr %s1161, 8
      %s1163 = scalar_lea.vmem %s7, %s1162
      // Predicated region
      $region49: #{tpu_custom_call.1} parent=47 // pred_check
        %p1164 = pneg %p188
      $region50: #{tpu_custom_call.1} parent=47 // pred_check_branch
        %1166 = sbr.rel (%p1164) target = $region52
      $region51: #{tpu_custom_call.1} parent=47 // pred_region
        %s1167 = smul.u32 8, %s18
      $region52: #{tpu_custom_call.1} parent=47 // pred_fallthru
        _
    $region48: #{tpu_custom_call.1} parent=5 // pred_fallthru
      _
    %p1168 = scmp.le.s32.totalorder 2, %s13
    // Predicated region
    $region53: #{tpu_custom_call.1} parent=5 // pred_check
      %p1169 = pneg %p1168
    $region54: #{tpu_custom_call.1} parent=5 // pred_check_branch
      %1171 = sbr.rel (%p1169) target = $region56
    $region55: #{tpu_custom_call.1} parent=5 // pred_region
      %s1172 = ssub.s32 %s13, 2
      // Predicated region
      $region57: #{tpu_custom_call.1} parent=55 // pred_check
        %p1173 = pneg %p194
      $region58: #{tpu_custom_call.1} parent=55 // pred_check_branch
        %1175 = sbr.rel (%p1173) target = $region60
      $region59: #{tpu_custom_call.1} parent=55 // pred_region
        %s1176 = smul.u32 8, %s19
        %p1177 = scmp.lt.s32.totalorder %s1176, 15
        %s1178 = scalar_select %p1177, %s1176, 15
        %s1179 = smul.addr %s1178, 8
        %s1180 = scalar_lea.vmem %s7, %s1179
      $region60: #{tpu_custom_call.1} parent=55 // pred_fallthru
        _
    $region56: #{tpu_custom_call.1} parent=5 // pred_fallthru
      _
  $region6: #{tpu_custom_call.1} parent=0 // loop_footer
    %s17 = sadd.s32 1, %s13
  $region7: #{tpu_custom_call.1} parent=0 // loop_footer_branch
    %12 = sbr.rel target = $region3
  $region8: #{tpu_custom_call.1} parent=0 // loop_exit
    _

</llo_original>
